<compile_context>
chip_gen: v7x
topology: tpu7x:2x2x1
jax: 0.10.0
libtpu: 0.0.40
codegen_flags: <defaults>
</compile_context>

<pallas_src>
import jax
import jax.numpy as jnp
from jax.experimental import pallas as pl
from jax.experimental.pallas import tpu as pltpu


def _round_up(x, m):
    return (x + m - 1) // m * m


def _linear_kernel(x_ref, w_ref, b_ref, o_ref):
    # bf16 operands on the MXU, f32 accumulate; f32 bias broadcast-add on the VPU.
    acc = jnp.dot(x_ref[...], w_ref[...], preferred_element_type=jnp.float32)
    o_ref[...] = (acc + b_ref[...]).astype(o_ref.dtype)


def head_forward(x, w, b):
    """Head forward pass.

    x: (B, D_in) f32, w: (D_out, D_in) f32 (PyTorch nn.Linear layout),
    b: (D_out,) f32  ->  (B, D_out) f32.
    """
    B, D_in = x.shape
    D_out = w.shape[0]

    # Lane-dense output (last dim -> multiple of 128) and sublane-dense batch.
    D_out_p = _round_up(D_out, 128)
    B_p = _round_up(B, 8)

    # Tile sizes: tn a multiple of 256 when possible (v6e/v7x MXU is 2x256x256),
    # else 128 (v5e-friendly). tm covers the (small) batch, capped at 256.
    tn = 256 if D_out_p % 256 == 0 else 128
    tm = B_p if B_p <= 256 else 256
    B_p = _round_up(B_p, tm)

    # bf16 operands for the MXU; bias stays f32 for the f32 accumulator add.
    x_p = jnp.pad(x.astype(jnp.bfloat16), ((0, B_p - B), (0, 0)))
    w_t = jnp.pad(jnp.transpose(w).astype(jnp.bfloat16),
                  ((0, 0), (0, D_out_p - D_out)))            # (D_in, D_out_p)
    b_p = jnp.pad(b.astype(jnp.float32),
                  (0, D_out_p - D_out)).reshape(1, D_out_p)  # (1, D_out_p)

    grid = (B_p // tm, D_out_p // tn)

    # TODO(synk): if D_in grows large enough that a (D_in, tn) weight tile no
    # longer fits VMEM (esp. v7x's 64 MiB), add a K grid axis + f32 accumulator.
    out_p = pl.pallas_call(
        _linear_kernel,
        out_shape=jax.ShapeDtypeStruct((B_p, D_out_p), jnp.float32),
        grid_spec=pl.GridSpec(
            grid=grid,
            in_specs=[
                pl.BlockSpec((tm, D_in), lambda i, j: (i, 0)),   # x tile
                pl.BlockSpec((D_in, tn), lambda i, j: (0, j)),   # weight tile
                pl.BlockSpec((1, tn), lambda i, j: (0, j)),      # bias tile
            ],
            out_specs=pl.BlockSpec((tm, tn), lambda i, j: (i, j)),
        ),
        compiler_params=pltpu.CompilerParams(
            dimension_semantics=("parallel", "parallel"),
        ),
        cost_estimate=pl.CostEstimate(
            flops=2 * B_p * D_in * D_out_p,
            transcendentals=0,
            bytes_accessed=(B_p * D_in * 2            # x (bf16)
                            + D_in * D_out_p * 2      # weight (bf16)
                            + D_out_p * 4             # bias (f32)
                            + B_p * D_out_p * 4),     # output (f32)
        ),
    )(x_p, w_t, b_p)

    return out_p[:B, :D_out]


if __name__ == "__main__":
    input_dim = 128
    output_dim = 200
    batch = 8

    key = jax.random.PRNGKey(0)
    k_x, k_w, k_b = jax.random.split(key, 3)

    # Deterministic synthetic parameters (shapes match nn.Linear(128, 200)).
    x = jax.random.normal(k_x, (batch, input_dim), dtype=jnp.float32)
    w = jax.random.normal(k_w, (output_dim, input_dim), dtype=jnp.float32) * 0.05
    b = jax.random.normal(k_b, (output_dim,), dtype=jnp.float32) * 0.05

    head = jax.jit(head_forward)
    out = jax.block_until_ready(head(x, w, b))

    assert out.shape == (batch, output_dim)

    # Reference at the kernel's precision (bf16 operands, f32 accumulate + bias).
    x_bf = x.astype(jnp.bfloat16).astype(jnp.float32)
    w_bf = w.astype(jnp.bfloat16).astype(jnp.float32)
    ref_bf = x_bf @ w_bf.T + b
    assert jnp.allclose(out, ref_bf, atol=1e-4, rtol=1e-4), "mismatch vs bf16-precision reference"

    # Loose check against the exact f32 PyTorch semantics (x @ W.T + b).
    ref_f32 = x @ w.T + b
    assert jnp.allclose(out, ref_f32, atol=5e-2, rtol=5e-2), "mismatch vs f32 reference"

    print("KERNEL_OK")
</pallas_src>

<mosaic_0001>
module attributes {stable_mosaic.version = 11 : i64} {
  func.func @_linear_kernel(%arg0: i32, %arg1: i32, %arg2: memref<8x128xbf16, #tpu.memory_space<vmem>>, %arg3: memref<128x256xbf16, #tpu.memory_space<vmem>>, %arg4: memref<1x256xf32, #tpu.memory_space<vmem>>, %arg5: memref<8x256xf32, #tpu.memory_space<vmem>>) attributes {dimension_semantics = [#tpu.dimension_semantics<parallel>, #tpu.dimension_semantics<parallel>], iteration_bounds = array<i64: 1, 1>, scalar_prefetch = 0 : i64, scratch_operands = 0 : i64, tpu.core_type = #tpu.core_type<tc>, window_params = [{transform_indices = @transform_0, window_bounds = array<i64: 8, 128>}, {transform_indices = @transform_1, window_bounds = array<i64: 128, 256>}, {transform_indices = @transform_2, window_bounds = array<i64: 1, 256>}, {transform_indices = @transform_3, window_bounds = array<i64: 8, 256>}]} {
    %c0 = arith.constant 0 : index
    %c0_0 = arith.constant 0 : index
    %0 = vector.load %arg2[%c0, %c0_0] : memref<8x128xbf16, #tpu.memory_space<vmem>>, vector<8x128xbf16>
    %c0_1 = arith.constant 0 : index
    %c0_2 = arith.constant 0 : index
    %1 = vector.load %arg3[%c0_1, %c0_2] : memref<128x256xbf16, #tpu.memory_space<vmem>>, vector<128x256xbf16>
    %cst = arith.constant dense<0.000000e+00> : vector<8x256xf32>
    %2 = tpu.matmul %0, %1, %cst {dimension_numbers = #tpu.dot_dimension_numbers<[1], [0], [0], [1], [0, 0, 1, 1], [], []>} : vector<8x128xbf16>, vector<128x256xbf16>, vector<8x256xf32> -> vector<8x256xf32>
    %c0_3 = arith.constant 0 : index
    %c0_4 = arith.constant 0 : index
    %3 = vector.load %arg4[%c0_3, %c0_4] : memref<1x256xf32, #tpu.memory_space<vmem>>, vector<1x256xf32>
    %4 = vector.broadcast %3 : vector<1x256xf32> to vector<8x256xf32>
    %5 = arith.addf %2, %4 : vector<8x256xf32>
    %c0_5 = arith.constant 0 : index
    %c0_6 = arith.constant 0 : index
    %6 = vector.load %arg5[%c0_5, %c0_6] : memref<8x256xf32, #tpu.memory_space<vmem>>, vector<8x256xf32>
    tpu.vector_store %arg5[%c0_5, %c0_6], %5 {strides = array<i32>} : memref<8x256xf32, #tpu.memory_space<vmem>>, vector<8x256xf32>,
    return
  }
  func.func @transform_0(%arg0: i32, %arg1: i32) -> (i32, i32) {
    %c0_i32 = arith.constant 0 : i32
    %c0_i32_0 = arith.constant 0 : i32
    return %arg0, %c0_i32 : i32, i32
  }
  func.func @transform_1(%arg0: i32, %arg1: i32) -> (i32, i32) {
    %c0_i32 = arith.constant 0 : i32
    %c0_i32_0 = arith.constant 0 : i32
    return %c0_i32, %arg1 : i32, i32
  }
  func.func @transform_2(%arg0: i32, %arg1: i32) -> (i32, i32) {
    %c0_i32 = arith.constant 0 : i32
    %c0_i32_0 = arith.constant 0 : i32
    return %c0_i32, %arg1 : i32, i32
  }
  func.func @transform_3(%arg0: i32, %arg1: i32) -> (i32, i32) {
    %c0_i32 = arith.constant 0 : i32
    return %arg0, %arg1 : i32, i32
  }
}

</mosaic_0001>

<llo_original>
// kernel: head_forward.1
$region0: #{head_forward.1}
  #allocation0 [shape = 'u32[]', space=smem, size = 0x4, offset = 0x4, fixed_abs, tag = 'smem constant byte address 0x4 - core index']
  #allocation1 [shape = 'u32[144,128]{1,0:T(1,128)}', space=vmem, size = 0x12000, scoped, tag = 'internal scratch']
  %s0 = inlined_call_operand.vmem [shape: bf16[8,128], index: 0, kind: input, shape index: {}]
  %s1 = inlined_call_operand.vmem [shape: bf16[128,256], index: 1, kind: input, shape index: {}]
  %s2 = inlined_call_operand.vmem [shape: f32[1,256], index: 2, kind: input, shape index: {}]
  %s3 = inlined_call_operand.hbm [shape: f32[8,256], index: 3, kind: output, shape index: {}]
  %s4 = sld [smem:[#allocation0]]
  $region22: #{head_forward.1} parent=0
    _
  %s6 = ssub.s32 1, %s4
  %s7 = scalar_select 0, %s6, %s4
  $region1: #{head_forward.1} parent=0
    #allocation2 [shape = 'u8[8192]{0}', space=vmem, size = 0x2000, scoped, tag = 'output window, operand 0, single buffered']
    #allocation3 [shape = 's32[1]{0}', space=sflag, size = 0x4, scoped, tag = 'scoped memory for head_forward.1']
    %8 = vsyncpa [#allocation3], 0
    // Predicated region
    $region2: #{head_forward.1} parent=1 // pred_check
      _
    $region3: #{head_forward.1} parent=1 // pred_check_branch
      %10 = sbr.rel (0) target = $region5
    $region4: #{head_forward.1} parent=1 // pred_region
      _
    $region5: #{head_forward.1} parent=1 // pred_fallthru
      _
    // Predicated region
    $region6: #{head_forward.1} parent=1 // pred_check
      _
    $region7: #{head_forward.1} parent=1 // pred_check_branch
      %12 = sbr.rel (0) target = $region9
    $region8: #{head_forward.1} parent=1 // pred_region
      _
    $region9: #{head_forward.1} parent=1 // pred_fallthru
      _
    // Predicated region
    $region10: #{head_forward.1} parent=1 // pred_check
      _
    $region11: #{head_forward.1} parent=1 // pred_check_branch
      %14 = sbr.rel (0) target = $region13
    $region12: #{head_forward.1} parent=1 // pred_region
      _
    $region13: #{head_forward.1} parent=1 // pred_fallthru
      _
    %v16 = vld [vmem:[%s0] sm:$0xf]
    %v17 = vld [vmem:[%s1] sm:$0xff]
    %v18 = vld [vmem:[%s1 + $0x8] sm:$0xff]
    %v19 = vld [vmem:[%s1 + $0x10] sm:$0xff]
    %v20 = vld [vmem:[%s1 + $0x18] sm:$0xff]
    %v21 = vld [vmem:[%s1 + $0x20] sm:$0xff]
    %v22 = vld [vmem:[%s1 + $0x28] sm:$0xff]
    %v23 = vld [vmem:[%s1 + $0x30] sm:$0xff]
    %v24 = vld [vmem:[%s1 + $0x38] sm:$0xff]
    %v25 = vld [vmem:[%s1 + $0x40] sm:$0xff]
    %v26 = vld [vmem:[%s1 + $0x48] sm:$0xff]
    %v27 = vld [vmem:[%s1 + $0x50] sm:$0xff]
    %v28 = vld [vmem:[%s1 + $0x58] sm:$0xff]
    %v29 = vld [vmem:[%s1 + $0x60] sm:$0xff]
    %v30 = vld [vmem:[%s1 + $0x68] sm:$0xff]
    %v31 = vld [vmem:[%s1 + $0x70] sm:$0xff]
    %v32 = vld [vmem:[%s1 + $0x78] sm:$0xff]
    %v33 = vld [vmem:[%s2] sm:$0x3]
    %v35 = vlaneseq
    %v36 = vshrl.u32 %v35, 7
    %v37 = vsub.s32 0, %v36
    %v38 = vrot.slane %v33, %v37
    %v39 = vlaneseq
    %v40 = vshrl.u32 %v39, 7
    %v41 = vsub.s32 1, %v40
    %v42 = vrot.slane %v33, %v41
    %v61 = vunpack.c.l.b16 %v17
    %v62 = vunpack.c.h.b16 %v17
    %v63 = vunpack.c.l.b16 %v18
    %v64 = vunpack.c.h.b16 %v18
    %v65 = vunpack.c.l.b16 %v19
    %v66 = vunpack.c.h.b16 %v19
    %v67 = vunpack.c.l.b16 %v20
    %v68 = vunpack.c.h.b16 %v20
    %v69 = vunpack.c.l.b16 %v21
    %v70 = vunpack.c.h.b16 %v21
    %v71 = vunpack.c.l.b16 %v22
    %v72 = vunpack.c.h.b16 %v22
    %v73 = vunpack.c.l.b16 %v23
    %v74 = vunpack.c.h.b16 %v23
    %v75 = vunpack.c.l.b16 %v24
    %v76 = vunpack.c.h.b16 %v24
    %v77 = vunpack.c.l.b16 %v25
    %v78 = vunpack.c.h.b16 %v25
    %v79 = vunpack.c.l.b16 %v26
    %v80 = vunpack.c.h.b16 %v26
    %v81 = vunpack.c.l.b16 %v27
    %v82 = vunpack.c.h.b16 %v27
    %v83 = vunpack.c.l.b16 %v28
    %v84 = vunpack.c.h.b16 %v28
    %v85 = vunpack.c.l.b16 %v29
    %v86 = vunpack.c.h.b16 %v29
    %v87 = vunpack.c.l.b16 %v30
    %v88 = vunpack.c.h.b16 %v30
    %v89 = vunpack.c.l.b16 %v31
    %v90 = vunpack.c.h.b16 %v31
    %v91 = vunpack.c.l.b16 %v32
    %v92 = vunpack.c.h.b16 %v32
    %v93 = vpack.c.b16 %v63, %v61
    %v94 = vpack.c.b16 %v64, %v62
    %v95 = vpack.c.b16 %v67, %v65
    %v96 = vpack.c.b16 %v68, %v66
    %v97 = vpack.c.b16 %v71, %v69
    %v98 = vpack.c.b16 %v72, %v70
    %v99 = vpack.c.b16 %v75, %v73
    %v100 = vpack.c.b16 %v76, %v74
    %v101 = vpack.c.b16 %v79, %v77
    %v102 = vpack.c.b16 %v80, %v78
    %v103 = vpack.c.b16 %v83, %v81
    %v104 = vpack.c.b16 %v84, %v82
    %v105 = vpack.c.b16 %v87, %v85
    %v106 = vpack.c.b16 %v88, %v86
    %v107 = vpack.c.b16 %v91, %v89
    %v108 = vpack.c.b16 %v92, %v90
    %125 = vmatprep.subr.bf16.mxu0 %v94
    %126 = vmatpush1.bf16.msra.mxu0 %v93
    %127 = vmatprep.subr.bf16.mxu0 %v96
    %128 = vmatpush1.bf16.msra.mxu0 %v95
    %129 = vmatprep.subr.bf16.mxu0 %v98
    %130 = vmatpush1.bf16.msra.mxu0 %v97
    %131 = vmatprep.subr.bf16.mxu0 %v100
    %132 = vmatpush1.bf16.msra.mxu0 %v99
    %133 = vmatprep.subr.bf16.mxu0 %v102
    %134 = vmatpush1.bf16.msra.mxu0 %v101
    %135 = vmatprep.subr.bf16.mxu0 %v104
    %136 = vmatpush1.bf16.msra.mxu0 %v103
    %137 = vmatprep.subr.bf16.mxu0 %v106
    %138 = vmatpush1.bf16.msra.mxu0 %v105
    %139 = vmatprep.subr.bf16.mxu0 %v108
    %140 = vmatpush1.bf16.msra.mxu0 %v107
    %141 = vmatprep.subr.bf16.mxu0 0
    %142 = vmatpush1.bf16.msra.mxu0 0
    %143 = vmatprep.subr.bf16.mxu0 0
    %144 = vmatpush1.bf16.msra.mxu0 0
    %145 = vmatprep.subr.bf16.mxu0 0
    %146 = vmatpush1.bf16.msra.mxu0 0
    %147 = vmatprep.subr.bf16.mxu0 0
    %148 = vmatpush1.bf16.msra.mxu0 0
    %149 = vmatprep.subr.bf16.mxu0 0
    %150 = vmatpush1.bf16.msra.mxu0 0
    %151 = vmatprep.subr.bf16.mxu0 0
    %152 = vmatpush1.bf16.msra.mxu0 0
    %153 = vmatprep.subr.bf16.mxu0 0
    %154 = vmatpush1.bf16.msra.mxu0 0
    %155 = vmatprep.subr.bf16.mxu0 0
    %156 = vmatpush1.bf16.msra.mxu0 0
    %157 = vmatprep.mubr.bf16.mxu0 0
    %158 = vmatmul.mubr.bf16.gmra.mrb[0].mxu0 %v16
    %v159 = vpop.f32.mrb[0].mxu0
    %v160 = vadd.f32 %v38, %v159
    %v161 = vpop.f32.mrb[0].mxu0
    %v162 = vadd.f32 %v42, %v161
    %v163 = vpop.f32.mrb[0].mxu0
    %v164 = vpop.f32.mrb[0].mxu0
    %165 = vdwg.mxu0
    %166 = vst [vmem:[#allocation2] sm:$0xff] %v160
    %167 = vst [vmem:[#allocation2 + $0x8] sm:$0xff] %v162
    // Predicated region
    $region14: #{head_forward.1} parent=1 // pred_check
      _
    $region15: #{head_forward.1} parent=1 // pred_check_branch
      %169 = sbr.rel (0) target = $region17
    $region16: #{head_forward.1} parent=1 // pred_region
      %s171 = ssub.s32 256, 256
      %172 = vsyncadd [#allocation3], %s171
      %s174 = sshll.u32 [#allocation2], 4
      %s175 = int_to_ptr.vmem [resolvable:$true] %s174
      %177 = dma.vmem_to_hbm [thread:$0]  %s175, 256, %s3, [#allocation3]
    $region17: #{head_forward.1} parent=1 // pred_fallthru
      _
    // Predicated region
    $region18: #{head_forward.1} parent=1 // pred_check
      _
    $region19: #{head_forward.1} parent=1 // pred_check_branch
      %179 = sbr.rel (0) target = $region21
    $region20: #{head_forward.1} parent=1 // pred_region
      %180 = dma.done [#allocation3], 256
    $region21: #{head_forward.1} parent=1 // pred_fallthru
      _
    %181 = vsyncpa [#allocation3], 1

</llo_original>
